<compile_context>
chip_gen: v7x
topology: tpu7x:2x2x1
jax: 0.10.0
libtpu: 0.0.40
codegen_flags: <defaults>
</compile_context>

<pallas_src>
import functools

import jax
import jax.numpy as jnp
from jax.experimental import pallas as pl
from jax.experimental.pallas import tpu as pltpu

_LANES = 128
_MAX_TILE_ROWS = 8192      # (8192, 128) f32 = 4 MiB per stream per pipeline buffer
_SUB_ROWS = 1024           # compute sub-chunk; bounds elementwise temporaries (~0.5 MiB)
_CAST_TARGET_TO_BF16 = True  # Self-CLAN targets are 0/1 maps -> bf16 is exact and halves
                             # the target stream's HBM bytes (fuses with upstream producers
                             # when called inside a larger jit).


def _detect_parallel_cores():
    """Best-effort: 2 on megacore chips (2 TensorCores behind one device), else 1."""
    try:
        kind = jax.devices()[0].device_kind.lower()
    except Exception:
        return 1
    if ("v4" in kind) or ("v5p" in kind) or ("7" in kind) or kind.strip() == "tpu v5":
        return 2
    return 1


def _vmem_limit_bytes():
    """Scoped-VMEM limit: enough for double-buffered 4 MiB tiles, per-generation headroom."""
    try:
        cap = int(pltpu.get_tpu_info().vmem_capacity_bytes)
    except Exception:
        cap = 64 << 20  # conservative fallback (v7x per-TensorCore physical VMEM)
    return int(min(40 << 20, max(32 << 20, cap // 2)))


_N_PARALLEL_CORES = _detect_parallel_cores()
_VMEM_LIMIT_BYTES = _vmem_limit_bytes()


def _round_up(a, b):
    return (a + b - 1) // b * b


def _make_kernel(tile_rows, sub_rows, has_weight):
    """Build the per-grid-step kernel, specialized on tiling and weighted/unweighted."""
    assert tile_rows % sub_rows == 0 and sub_rows % 8 == 0
    n_sub = tile_rows // sub_rows

    def kernel(*refs):
        if has_weight:
            ints_ref, ab_ref, x_ref, t_ref, w_ref, out_ref = refs
        else:
            ints_ref, x_ref, t_ref, out_ref = refs
            w_ref = None

        c = pl.program_id(0)    # "parallel" axis (megacore split); own (8,128) out block
        i = pl.program_id(1)    # "arbitrary" reduction axis

        @pl.when(i == 0)
        def _():
            out_ref[...] = jnp.zeros_like(out_ref)

        # Row-based validity (rows of 128 lanes): int32-safe for huge inputs.
        n_rows = ints_ref[0]        # number of valid 128-wide rows in the flat input
        tail_lanes = ints_ref[1]    # valid lanes in the last row (1..128)
        tile_row0 = (c * pl.num_programs(1) + i) * tile_rows
        if has_weight:
            alpha = ab_ref[0]
            beta = ab_ref[1]

        def _process(r0):
            x = x_ref[pl.ds(r0, sub_rows), :].astype(jnp.float32)
            t = t_ref[pl.ds(r0, sub_rows), :].astype(jnp.float32)
            # Stable softplus form of the PyTorch expression:
            #   max(-x,0) + log(exp(-max_val) + exp(-x - max_val)) == max(-x,0)+log(1+exp(-|x|))
            loss = x - x * t + jnp.maximum(-x, 0.0) + jnp.log(1.0 + jnp.exp(-jnp.abs(x)))
            if has_weight:
                w = w_ref[pl.ds(r0, sub_rows), :].astype(jnp.float32)
                loss = loss * (alpha + beta * w)   # == alpha*loss + beta*loss*w

            def _acc(vals):
                # Per-(sublane,lane) partial sums: pure vreg adds into the (8,128) block.
                out_ref[...] += vals.reshape(sub_rows // 8, 8, _LANES).sum(axis=0)

            base_row = tile_row0 + r0
            needs_mask = base_row + sub_rows >= n_rows   # chunk touches the ragged tail?

            @pl.when(needs_mask)
            def _():
                row = base_row + jax.lax.broadcasted_iota(jnp.int32, (sub_rows, _LANES), 0)
                col = jax.lax.broadcasted_iota(jnp.int32, (sub_rows, _LANES), 1)
                valid = (row < n_rows - 1) | ((row == n_rows - 1) & (col < tail_lanes))
                _acc(jnp.where(valid, loss, 0.0))

            @pl.when(jnp.logical_not(needs_mask))
            def _():
                _acc(loss)

        if n_sub == 1:
            _process(0)
        else:
            @pl.loop(0, n_sub)
            def _(s):
                _process(pl.multiple_of(s * sub_rows, sub_rows))

    return kernel


@functools.partial(jax.jit, static_argnames=("size_average", "has_weight"))
def _wbce_call(x, t, w, alpha, beta, size_average, has_weight):
    total = x.size
    n_rows = pl.cdiv(total, _LANES)                  # valid 128-wide rows
    tail_lanes = total - (n_rows - 1) * _LANES       # valid lanes in the last row

    tile_rows = min(_MAX_TILE_ROWS, _round_up(n_rows, 8))
    if tile_rows > _SUB_ROWS:
        tile_rows = _round_up(tile_rows, _SUB_ROWS)  # keep sub-chunking exact
        sub_rows = _SUB_ROWS
    else:
        sub_rows = tile_rows
    n_tiles = pl.cdiv(n_rows, tile_rows)
    ncores = max(1, min(_N_PARALLEL_CORES, n_tiles))
    n_per_core = pl.cdiv(n_tiles, ncores)

    padded_total = n_rows * _LANES
    pad = padded_total - total

    def _prep(a, prefer_bf16=False):
        a = a.reshape(-1)
        if a.dtype == jnp.bfloat16 or a.dtype == jnp.float16:
            pass                               # already a narrow stream: keep, upcast in-kernel
        elif prefer_bf16:
            a = a.astype(jnp.bfloat16)         # halves this stream's HBM bytes
        elif a.dtype != jnp.float32:
            a = a.astype(jnp.float32)
        if pad:
            # Only sizes that are not a multiple of 128 pay this copy (pad <= 127 elems);
            # 128-aligned inputs go through as free reshapes, partial last grid block is
            # handled by the in-kernel mask.
            a = jnp.pad(a, (0, pad))
        return a.reshape(n_rows, _LANES)

    x2 = _prep(x)
    t2 = _prep(t, prefer_bf16=_CAST_TARGET_TO_BF16)

    ints_s = jnp.asarray([n_rows, tail_lanes], jnp.int32)
    smem_spec = pl.BlockSpec(memory_space=pltpu.MemorySpace.SMEM)

    def tile_index(c, i):
        # Clamp so a dead iteration of an uneven core split re-reads the last tile
        # (contribution masked to zero in-kernel) instead of indexing out of bounds.
        return (jnp.minimum(c * n_per_core + i, n_tiles - 1), 0)

    # NOTE: if a trace shows exposed DMA at tile boundaries, pipeline_mode=pl.Buffered(3)
    # on tile_spec is a cheap experiment (re-check the VMEM budget on v7x first).
    tile_spec = pl.BlockSpec((tile_rows, _LANES), tile_index)
    out_spec = pl.BlockSpec((8, _LANES), lambda c, i: (c, 0))
    out_shape = jax.ShapeDtypeStruct((ncores * 8, _LANES), jnp.float32)
    cparams = pltpu.CompilerParams(
        dimension_semantics=("parallel", "arbitrary"),
        vmem_limit_bytes=_VMEM_LIMIT_BYTES)

    kernel = _make_kernel(tile_rows, sub_rows, has_weight)

    if has_weight:
        w2 = _prep(w)
        ab_s = jnp.stack([jnp.asarray(alpha, jnp.float32),
                          jnp.asarray(beta, jnp.float32)])
        partials = pl.pallas_call(
            kernel,
            out_shape=out_shape,
            grid_spec=pl.GridSpec(
                grid=(ncores, n_per_core),
                in_specs=[smem_spec, smem_spec, tile_spec, tile_spec, tile_spec],
                out_specs=out_spec),
            compiler_params=cparams,
        )(ints_s, ab_s, x2, t2, w2)
    else:
        partials = pl.pallas_call(
            kernel,
            out_shape=out_shape,
            grid_spec=pl.GridSpec(
                grid=(ncores, n_per_core),
                in_specs=[smem_spec, tile_spec, tile_spec],
                out_specs=out_spec),
            compiler_params=cparams,
        )(ints_s, x2, t2)

    loss_sum = jnp.sum(partials)   # tiny (ncores*8,128) cross-lane reduce done by XLA
    if size_average:
        return loss_sum / jnp.float32(total)
    return loss_sum


def weighted_bce_with_logits_loss(input, target, weight, alpha, beta,
                                  size_average=True):
    """JAX/Pallas equivalent of WeightedBCEWithLogitsLoss.forward."""
    if target.shape != input.shape:
        raise ValueError(
            "Target size ({}) must be the same as input size ({})".format(
                target.shape, input.shape))
    has_weight = weight is not None
    return _wbce_call(input, target, weight, alpha, beta,
                      size_average, has_weight)


def _reference(input, target, weight, alpha, beta, size_average=True):
    x = input.astype(jnp.float32)
    t = target.astype(jnp.float32)
    max_val = jnp.maximum(-x, 0.0)
    loss = x - x * t + max_val + jnp.log(jnp.exp(-max_val) + jnp.exp(-x - max_val))
    if weight is not None:
        loss = alpha * loss + beta * loss * weight.astype(jnp.float32)
    return loss.mean() if size_average else loss.sum()


if __name__ == "__main__":
    key = jax.random.PRNGKey(0)
    keys = jax.random.split(key, 9)
    alpha, beta = 0.7, 0.3

    # Case 1: discriminator-style NCHW map; 2048 elements = 16*128 -> zero-copy path.
    shape = (2, 4, 16, 16)
    x = jax.random.normal(keys[0], shape, dtype=jnp.float32)
    t = (jax.random.uniform(keys[1], shape) > 0.5).astype(jnp.float32)
    w = jax.random.uniform(keys[2], shape, dtype=jnp.float32)

    out_w = jax.block_until_ready(weighted_bce_with_logits_loss(x, t, w, alpha, beta))
    ref_w = _reference(x, t, w, alpha, beta)
    assert jnp.allclose(out_w, ref_w, rtol=1e-5, atol=1e-5), (out_w, ref_w)

    out_n = jax.block_until_ready(weighted_bce_with_logits_loss(x, t, None, alpha, beta))
    ref_n = _reference(x, t, None, alpha, beta)
    assert jnp.allclose(out_n, ref_n, rtol=1e-5, atol=1e-5), (out_n, ref_n)

    # Case 2: ragged size (not a multiple of 128) -> exercises the in-kernel tail
    # mask and the minimal-pad fallback; also checks size_average=False.
    shape2 = (2, 3, 15, 17)
    x2 = jax.random.normal(keys[3], shape2, dtype=jnp.float32)
    t2 = (jax.random.uniform(keys[4], shape2) > 0.5).astype(jnp.float32)
    w2 = jax.random.uniform(keys[5], shape2, dtype=jnp.float32)

    out_w2 = jax.block_until_ready(
        weighted_bce_with_logits_loss(x2, t2, w2, alpha, beta, size_average=False))
    ref_w2 = _reference(x2, t2, w2, alpha, beta, size_average=False)
    assert jnp.allclose(out_w2, ref_w2, rtol=1e-5, atol=1e-3), (out_w2, ref_w2)

    out_n2 = jax.block_until_ready(
        weighted_bce_with_logits_loss(x2, t2, None, alpha, beta))
    ref_n2 = _reference(x2, t2, None, alpha, beta)
    assert jnp.allclose(out_n2, ref_n2, rtol=1e-5, atol=1e-5), (out_n2, ref_n2)

    # Case 3: big enough for >1 grid tile (10240 rows > 8192) -> exercises the
    # multi-tile accumulation, the sub-chunk loop, the partial last block and
    # (on megacore chips) the 2-core parallel split; bf16 logits/targets exercise
    # the mixed-dtype (reduced HBM bytes) streams.
    shape3 = (2, 2, 512, 640)
    x3 = jax.random.normal(keys[6], shape3, dtype=jnp.bfloat16)
    t3 = (jax.random.uniform(keys[7], shape3) > 0.5).astype(jnp.bfloat16)
    w3 = jax.random.uniform(keys[8], shape3, dtype=jnp.float32)

    out_w3 = jax.block_until_ready(
        weighted_bce_with_logits_loss(x3, t3, w3, alpha, beta))
    ref_w3 = _reference(x3, t3, w3, alpha, beta)
    assert jnp.allclose(out_w3, ref_w3, rtol=5e-4, atol=5e-4), (out_w3, ref_w3)

    print("KERNEL_OK")
</pallas_src>

<mosaic_0001>
module attributes {stable_mosaic.version = 11 : i64} {
  func.func @kernel(%arg0: i32, %arg1: i32, %arg2: memref<2xi32, #tpu.memory_space<smem>>, %arg3: memref<2xf32, #tpu.memory_space<smem>>, %arg4: memref<16x128xf32, #tpu.memory_space<vmem>>, %arg5: memref<16x128xbf16, #tpu.memory_space<vmem>>, %arg6: memref<16x128xf32, #tpu.memory_space<vmem>>, %arg7: memref<8x128xf32, #tpu.memory_space<vmem>>) attributes {dimension_semantics = [#tpu.dimension_semantics<parallel>, #tpu.dimension_semantics<arbitrary>], iteration_bounds = array<i64: 1, 1>, scalar_prefetch = 0 : i64, scratch_operands = 0 : i64, tpu.core_type = #tpu.core_type<tc>, window_params = [{transform_indices = @transform_0, window_bounds = array<i64: 2>}, {transform_indices = @transform_1, window_bounds = array<i64: 2>}, {transform_indices = @transform_2, window_bounds = array<i64: 16, 128>}, {transform_indices = @transform_3, window_bounds = array<i64: 16, 128>}, {transform_indices = @transform_4, window_bounds = array<i64: 16, 128>}, {transform_indices = @transform_5, window_bounds = array<i64: 8, 128>}]} {
    %c0_i32 = arith.constant 0 : i32
    %0 = arith.cmpi eq, %arg1, %c0_i32 : i32
    %1 = arith.extui %0 : i1 to i32
    %c0_i32_0 = arith.constant 0 : i32
    %2 = arith.cmpi ne, %1, %c0_i32_0 : i32
    scf.if %2 {
      %cst_16 = arith.constant 0.000000e+00 : f32
      %42 = vector.broadcast %cst_16 : f32 to vector<8x128xf32>
      %c0_17 = arith.constant 0 : index
      %c0_18 = arith.constant 0 : index
      %43 = vector.load %arg7[%c0_17, %c0_18] : memref<8x128xf32, #tpu.memory_space<vmem>>, vector<8x128xf32>
      tpu.vector_store %arg7[%c0_17, %c0_18], %42 {strides = array<i32>} : memref<8x128xf32, #tpu.memory_space<vmem>>, vector<8x128xf32>,
    } else {
    }
    %c0 = arith.constant 0 : index
    %3 = memref.load %arg2[%c0] : memref<2xi32, #tpu.memory_space<smem>>
    %c1 = arith.constant 1 : index
    %4 = memref.load %arg2[%c1] : memref<2xi32, #tpu.memory_space<smem>>
    %c1_i32 = arith.constant 1 : i32
    %5 = arith.muli %arg0, %c1_i32 : i32
    %6 = arith.addi %5, %arg1 : i32
    %c16_i32 = arith.constant 16 : i32
    %7 = arith.muli %6, %c16_i32 : i32
    %c0_1 = arith.constant 0 : index
    %8 = memref.load %arg3[%c0_1] : memref<2xf32, #tpu.memory_space<smem>>
    %c1_2 = arith.constant 1 : index
    %9 = memref.load %arg3[%c1_2] : memref<2xf32, #tpu.memory_space<smem>>
    %c0_3 = arith.constant 0 : index
    %c0_4 = arith.constant 0 : index
    %10 = vector.load %arg4[%c0_3, %c0_4] : memref<16x128xf32, #tpu.memory_space<vmem>>, vector<16x128xf32>
    %c0_5 = arith.constant 0 : index
    %c0_6 = arith.constant 0 : index
    %11 = vector.load %arg5[%c0_5, %c0_6] : memref<16x128xbf16, #tpu.memory_space<vmem>>, vector<16x128xbf16>
    %12 = arith.extf %11 : vector<16x128xbf16> to vector<16x128xf32>
    %13 = arith.mulf %10, %12 : vector<16x128xf32>
    %14 = arith.subf %10, %13 : vector<16x128xf32>
    %cst = arith.constant 0.000000e+00 : f32
    %15 = vector.broadcast %cst : f32 to vector<16x128xf32>
    %16 = arith.subf %15, %10 : vector<16x128xf32>
    %cst_7 = arith.constant 0.000000e+00 : f32
    %17 = vector.broadcast %cst_7 : f32 to vector<16x128xf32>
    %18 = arith.maximumf %16, %17 : vector<16x128xf32>
    %19 = arith.addf %14, %18 : vector<16x128xf32>
    %20 = math.absf %10 : vector<16x128xf32>
    %cst_8 = arith.constant 0.000000e+00 : f32
    %21 = vector.broadcast %cst_8 : f32 to vector<16x128xf32>
    %22 = arith.subf %21, %20 : vector<16x128xf32>
    %23 = math.exp %22 : vector<16x128xf32>
    %cst_9 = arith.constant 1.000000e+00 : f32
    %24 = vector.broadcast %cst_9 : f32 to vector<16x128xf32>
    %25 = arith.addf %24, %23 : vector<16x128xf32>
    %26 = math.log %25 : vector<16x128xf32>
    %27 = arith.addf %19, %26 : vector<16x128xf32>
    %c0_10 = arith.constant 0 : index
    %c0_11 = arith.constant 0 : index
    %28 = vector.load %arg6[%c0_10, %c0_11] : memref<16x128xf32, #tpu.memory_space<vmem>>, vector<16x128xf32>
    %29 = vector.broadcast %9 : f32 to vector<16x128xf32>
    %30 = arith.mulf %29, %28 : vector<16x128xf32>
    %31 = vector.broadcast %8 : f32 to vector<16x128xf32>
    %32 = arith.addf %31, %30 : vector<16x128xf32>
    %33 = arith.mulf %27, %32 : vector<16x128xf32>
    %c0_i32_12 = arith.constant 0 : i32
    %34 = arith.addi %7, %c0_i32_12 : i32
    %c16_i32_13 = arith.constant 16 : i32
    %35 = arith.addi %34, %c16_i32_13 : i32
    %36 = arith.cmpi sge, %35, %3 : i32
    %37 = arith.extui %36 : i1 to i32
    %c0_i32_14 = arith.constant 0 : i32
    %38 = arith.cmpi ne, %37, %c0_i32_14 : i32
    scf.if %38 {
      %42 = tpu.iota {dimensions = array<i32: 0>} : vector<16x128xi32>
      %43 = vector.broadcast %34 : i32 to vector<16x128xi32>
      %44 = arith.addi %43, %42 : vector<16x128xi32>
      %45 = tpu.iota {dimensions = array<i32: 1>} : vector<16x128xi32>
      %c1_i32_16 = arith.constant 1 : i32
      %46 = arith.subi %3, %c1_i32_16 : i32
      %47 = vector.broadcast %46 : i32 to vector<16x128xi32>
      %48 = arith.cmpi slt, %44, %47 : vector<16x128xi32>
      %c1_i32_17 = arith.constant 1 : i32
      %49 = arith.subi %3, %c1_i32_17 : i32
      %50 = vector.broadcast %49 : i32 to vector<16x128xi32>
      %51 = arith.cmpi eq, %44, %50 : vector<16x128xi32>
      %52 = vector.broadcast %4 : i32 to vector<16x128xi32>
      %53 = arith.cmpi slt, %45, %52 : vector<16x128xi32>
      %54 = arith.andi %51, %53 : vector<16x128xi1>
      %55 = arith.ori %48, %54 : vector<16x128xi1>
      %cst_18 = arith.constant 0.000000e+00 : f32
      %56 = vector.broadcast %cst_18 : f32 to vector<16x128xf32>
      %57 = arith.select %55, %33, %56 : vector<16x128xi1>, vector<16x128xf32>
      %c0_19 = arith.constant 0 : index
      %c0_20 = arith.constant 0 : index
      %58 = vector.load %arg7[%c0_19, %c0_20] : memref<8x128xf32, #tpu.memory_space<vmem>>, vector<8x128xf32>
      %59 = vector.shape_cast %57 : vector<16x128xf32> to vector<2x8x128xf32>
      %cst_21 = arith.constant dense<0.000000e+00> : vector<8x128xf32>
      %60 = vector.multi_reduction <add>, %59, %cst_21 [0] : vector<2x8x128xf32> to vector<8x128xf32>
      %61 = arith.addf %58, %60 : vector<8x128xf32>
      %c0_22 = arith.constant 0 : index
      %c0_23 = arith.constant 0 : index
      %62 = vector.load %arg7[%c0_22, %c0_23] : memref<8x128xf32, #tpu.memory_space<vmem>>, vector<8x128xf32>
      tpu.vector_store %arg7[%c0_22, %c0_23], %61 {strides = array<i32>} : memref<8x128xf32, #tpu.memory_space<vmem>>, vector<8x128xf32>,
    } else {
    }
    %true = arith.constant true
    %39 = arith.xori %36, %true : i1
    %40 = arith.extui %39 : i1 to i32
    %c0_i32_15 = arith.constant 0 : i32
    %41 = arith.cmpi ne, %40, %c0_i32_15 : i32
    scf.if %41 {
      %c0_16 = arith.constant 0 : index
      %c0_17 = arith.constant 0 : index
      %42 = vector.load %arg7[%c0_16, %c0_17] : memref<8x128xf32, #tpu.memory_space<vmem>>, vector<8x128xf32>
      %43 = vector.shape_cast %33 : vector<16x128xf32> to vector<2x8x128xf32>
      %cst_18 = arith.constant dense<0.000000e+00> : vector<8x128xf32>
      %44 = vector.multi_reduction <add>, %43, %cst_18 [0] : vector<2x8x128xf32> to vector<8x128xf32>
      %45 = arith.addf %42, %44 : vector<8x128xf32>
      %c0_19 = arith.constant 0 : index
      %c0_20 = arith.constant 0 : index
      %46 = vector.load %arg7[%c0_19, %c0_20] : memref<8x128xf32, #tpu.memory_space<vmem>>, vector<8x128xf32>
      tpu.vector_store %arg7[%c0_19, %c0_20], %45 {strides = array<i32>} : memref<8x128xf32, #tpu.memory_space<vmem>>, vector<8x128xf32>,
    } else {
    }
    return
  }
  func.func @transform_0(%arg0: i32, %arg1: i32) -> i32 {
    %c0_i32 = arith.constant 0 : i32
    %c0_i32_0 = arith.constant 0 : i32
    return %c0_i32 : i32
  }
  func.func @transform_1(%arg0: i32, %arg1: i32) -> i32 {
    %c0_i32 = arith.constant 0 : i32
    %c0_i32_0 = arith.constant 0 : i32
    return %c0_i32 : i32
  }
  func.func @transform_2(%arg0: i32, %arg1: i32) -> (i32, i32) {
    %c1_i32 = arith.constant 1 : i32
    %0 = arith.muli %arg0, %c1_i32 : i32
    %1 = arith.addi %0, %arg1 : i32
    %c0_i32 = arith.constant 0 : i32
    %2 = arith.minsi %1, %c0_i32 : i32
    %c0_i32_0 = arith.constant 0 : i32
    %c0_i32_1 = arith.constant 0 : i32
    return %2, %c0_i32_0 : i32, i32
  }
  func.func @transform_3(%arg0: i32, %arg1: i32) -> (i32, i32) {
    %c1_i32 = arith.constant 1 : i32
    %0 = arith.muli %arg0, %c1_i32 : i32
    %1 = arith.addi %0, %arg1 : i32
    %c0_i32 = arith.constant 0 : i32
    %2 = arith.minsi %1, %c0_i32 : i32
    %c0_i32_0 = arith.constant 0 : i32
    %c0_i32_1 = arith.constant 0 : i32
    return %2, %c0_i32_0 : i32, i32
  }
  func.func @transform_4(%arg0: i32, %arg1: i32) -> (i32, i32) {
    %c1_i32 = arith.constant 1 : i32
    %0 = arith.muli %arg0, %c1_i32 : i32
    %1 = arith.addi %0, %arg1 : i32
    %c0_i32 = arith.constant 0 : i32
    %2 = arith.minsi %1, %c0_i32 : i32
    %c0_i32_0 = arith.constant 0 : i32
    %c0_i32_1 = arith.constant 0 : i32
    return %2, %c0_i32_0 : i32, i32
  }
  func.func @transform_5(%arg0: i32, %arg1: i32) -> (i32, i32) {
    %c0_i32 = arith.constant 0 : i32
    %c0_i32_0 = arith.constant 0 : i32
    return %arg0, %c0_i32 : i32, i32
  }
}

</mosaic_0001>

<llo_original>
// kernel: _wbce_call.1
$region0: #{_wbce_call.1}
  #allocation0 [shape = 'u32[]', space=smem, size = 0x4, offset = 0x4, fixed_abs, tag = 'smem constant byte address 0x4 - core index']
  #allocation1 [shape = 'u32[144,128]{1,0:T(1,128)}', space=vmem, size = 0x12000, scoped, tag = 'internal scratch']
  %s0 = inlined_call_operand.vmem [shape: s32[2], index: 0, kind: input, shape index: {}]
  %s1 = inlined_call_operand.vmem [shape: f32[2], index: 1, kind: input, shape index: {}]
  %s2 = inlined_call_operand.vmem [shape: f32[16,128], index: 2, kind: input, shape index: {}]
  %s3 = inlined_call_operand.vmem [shape: bf16[16,128], index: 3, kind: input, shape index: {}]
  %s4 = inlined_call_operand.vmem [shape: f32[16,128], index: 4, kind: input, shape index: {}]
  %s5 = inlined_call_operand.vmem [shape: f32[8,128], index: 5, kind: output, shape index: {}]
  %s6 = sld [smem:[#allocation0]]
  $region50: #{_wbce_call.1} parent=0
    _
  %s8 = ssub.s32 1, %s6
  %s9 = scalar_select 0, %s8, %s6
  $region1: #{_wbce_call.1} parent=0
    #allocation2 [shape = 'u8[512]{0}', space=smem, size = 0x200, scoped, tag = 'input window, operand 0, single buffered']
    #allocation3 [shape = 's32[1]{0}', space=sflag, size = 0x4, scoped, tag = 'scoped memory for _wbce_call.1']
    #allocation4 [shape = 'u8[512]{0}', space=smem, size = 0x200, scoped, tag = 'input window, operand 1, single buffered']
    #allocation5 [shape = 's32[1]{0}', space=sflag, size = 0x4, scoped, tag = 'scoped memory for _wbce_call.1']
    %10 = vsyncpa [#allocation3], 0
    %11 = vsyncpa [#allocation5], 0
    // Predicated region
    $region2: #{_wbce_call.1} parent=1 // pred_check
      _
    $region3: #{_wbce_call.1} parent=1 // pred_check_branch
      %13 = sbr.rel (0) target = $region5
    $region4: #{_wbce_call.1} parent=1 // pred_region
      %s15 = ssub.s32 16, 16
      %16 = vsyncadd [#allocation3], %s15
      %s18 = sshll.u32 %s0, 4
      %s19 = int_to_ptr.vmem [resolvable:$true] %s18
      %21 = dma.vmem_to_smem %s19, 16, [#allocation2], [#allocation3]
    $region5: #{_wbce_call.1} parent=1 // pred_fallthru
      _
    // Predicated region
    $region6: #{_wbce_call.1} parent=1 // pred_check
      _
    $region7: #{_wbce_call.1} parent=1 // pred_check_branch
      %23 = sbr.rel (0) target = $region9
    $region8: #{_wbce_call.1} parent=1 // pred_region
      %s25 = ssub.s32 16, 16
      %26 = vsyncadd [#allocation5], %s25
      %s28 = sshll.u32 %s1, 4
      %s29 = int_to_ptr.vmem [resolvable:$true] %s28
      %31 = dma.vmem_to_smem %s29, 16, [#allocation4], [#allocation5]
    $region9: #{_wbce_call.1} parent=1 // pred_fallthru
      _
    // Predicated region
    $region10: #{_wbce_call.1} parent=1 // pred_check
      _
    $region11: #{_wbce_call.1} parent=1 // pred_check_branch
      %33 = sbr.rel (0) target = $region13
    $region12: #{_wbce_call.1} parent=1 // pred_region
      %s34 = sadd.s32 0, 0
      %p35 = scmp.lt.s32.totalorder %s34, 0
      %s36 = scalar_select %p35, %s34, 0
      %s37 = smul.u32 2, %s36
      %p38 = scmp.lt.s32.totalorder %s37, 1
      %s39 = scalar_select %p38, %s37, 1
      %s40 = smul.addr %s39, 8
      %s41 = scalar_lea.vmem %s2, %s40
      %s42 = sadd.s32 0, 0
      %p43 = scmp.lt.s32.totalorder %s42, 0
      %s44 = scalar_select %p43, %s42, 0
      %s45 = smul.u32 2, %s44
    $region13: #{_wbce_call.1} parent=1 // pred_fallthru
      _
    // Predicated region
    $region14: #{_wbce_call.1} parent=1 // pred_check
      _
    $region15: #{_wbce_call.1} parent=1 // pred_check_branch
      %47 = sbr.rel (0) target = $region17
    $region16: #{_wbce_call.1} parent=1 // pred_region
      %s48 = sadd.s32 0, 0
      %p49 = scmp.lt.s32.totalorder %s48, 0
      %s50 = scalar_select %p49, %s48, 0
      %s51 = smul.u32 2, %s50
      %p52 = scmp.lt.s32.totalorder %s51, 1
      %s53 = scalar_select %p52, %s51, 1
      %s54 = smul.addr %s53, 4
      %s55 = scalar_lea.vmem %s3, %s54
      %s56 = sadd.s32 0, 0
      %p57 = scmp.lt.s32.totalorder %s56, 0
      %s58 = scalar_select %p57, %s56, 0
      %s59 = smul.u32 2, %s58
    $region17: #{_wbce_call.1} parent=1 // pred_fallthru
      _
    // Predicated region
    $region18: #{_wbce_call.1} parent=1 // pred_check
      _
    $region19: #{_wbce_call.1} parent=1 // pred_check_branch
      %61 = sbr.rel (0) target = $region21
    $region20: #{_wbce_call.1} parent=1 // pred_region
      %s62 = sadd.s32 0, 0
      %p63 = scmp.lt.s32.totalorder %s62, 0
      %s64 = scalar_select %p63, %s62, 0
      %s65 = smul.u32 2, %s64
      %p66 = scmp.lt.s32.totalorder %s65, 1
      %s67 = scalar_select %p66, %s65, 1
      %s68 = smul.addr %s67, 8
      %s69 = scalar_lea.vmem %s4, %s68
      %s70 = sadd.s32 0, 0
      %p71 = scmp.lt.s32.totalorder %s70, 0
      %s72 = scalar_select %p71, %s70, 0
      %s73 = smul.u32 2, %s72
    $region21: #{_wbce_call.1} parent=1 // pred_fallthru
      _
    // Predicated region
    $region22: #{_wbce_call.1} parent=1 // pred_check
      _
    $region23: #{_wbce_call.1} parent=1 // pred_check_branch
      %75 = sbr.rel (0) target = $region25
    $region24: #{_wbce_call.1} parent=1 // pred_region
      %76 = dma.done [#allocation3], 16
    $region25: #{_wbce_call.1} parent=1 // pred_fallthru
      _
    // Predicated region
    $region26: #{_wbce_call.1} parent=1 // pred_check
      _
    $region27: #{_wbce_call.1} parent=1 // pred_check_branch
      %78 = sbr.rel (0) target = $region29
    $region28: #{_wbce_call.1} parent=1 // pred_region
      %79 = dma.done [#allocation5], 16
    $region29: #{_wbce_call.1} parent=1 // pred_fallthru
      _
    %80 = sfence
    %s81 = sadd.s32 0, 0
    %p82 = scmp.lt.s32.totalorder %s81, 0
    %s83 = scalar_select %p82, %s81, 0
    %s84 = smul.u32 2, %s83
    %p85 = scmp.lt.s32.totalorder %s84, 1
    %s86 = scalar_select %p85, %s84, 1
    %s87 = smul.addr %s86, 8
    %s88 = scalar_lea.vmem %s2, %s87
    %s89 = sadd.s32 0, 0
    %p90 = scmp.lt.s32.totalorder %s89, 0
    %s91 = scalar_select %p90, %s89, 0
    %s92 = smul.u32 2, %s91
    %p93 = scmp.lt.s32.totalorder %s92, 1
    %s94 = scalar_select %p93, %s92, 1
    %s95 = smul.addr %s94, 4
    %s96 = scalar_lea.vmem %s3, %s95
    %s97 = sadd.s32 0, 0
    %p98 = scmp.lt.s32.totalorder %s97, 0
    %s99 = scalar_select %p98, %s97, 0
    %s100 = smul.u32 2, %s99
    %p101 = scmp.lt.s32.totalorder %s100, 1
    %s102 = scalar_select %p101, %s100, 1
    %s103 = smul.addr %s102, 8
    %s104 = scalar_lea.vmem %s4, %s103
    %s105 = sadd.s32 0, 0
    %p106 = scmp.lt.s32.totalorder %s105, 0
    %s107 = scalar_select %p106, %s105, 0
    %s108 = smul.u32 2, %s107
    %p109 = scmp.lt.s32.totalorder %s108, 1
    %s110 = scalar_select %p109, %s108, 1
    %s111 = smul.addr %s110, 8
    %s112 = scalar_lea.vmem %s2, %s111
    %s113 = sadd.s32 0, 0
    %p114 = scmp.lt.s32.totalorder %s113, 0
    %s115 = scalar_select %p114, %s113, 0
    %s116 = smul.u32 2, %s115
    %s117 = sadd.s32 0, 0
    %p118 = scmp.lt.s32.totalorder %s117, 0
    %s119 = scalar_select %p118, %s117, 0
    %s120 = smul.u32 2, %s119
    %p121 = scmp.lt.s32.totalorder %s120, 1
    %s122 = scalar_select %p121, %s120, 1
    %s123 = smul.addr %s122, 4
    %s124 = scalar_lea.vmem %s3, %s123
    %s125 = sadd.s32 0, 0
    %p126 = scmp.lt.s32.totalorder %s125, 0
    %s127 = scalar_select %p126, %s125, 0
    %s128 = smul.u32 2, %s127
    %s129 = sadd.s32 0, 0
    %p130 = scmp.lt.s32.totalorder %s129, 0
    %s131 = scalar_select %p130, %s129, 0
    %s132 = smul.u32 2, %s131
    %p133 = scmp.lt.s32.totalorder %s132, 1
    %s134 = scalar_select %p133, %s132, 1
    %s135 = smul.addr %s134, 8
    %s136 = scalar_lea.vmem %s4, %s135
    %s137 = sadd.s32 0, 0
    %p138 = scmp.lt.s32.totalorder %s137, 0
    %s139 = scalar_select %p138, %s137, 0
    %s140 = smul.u32 2, %s139
    %p141 = scmp.eq.s32.totalorder 0, 0
    // Predicated region
    $region30: #{_wbce_call.1} parent=1 // pred_check
      %p142 = pneg %p141
    $region31: #{_wbce_call.1} parent=1 // pred_check_branch
      %144 = sbr.rel (%p142) target = $region33
    $region32: #{_wbce_call.1} parent=1 // pred_region
      %145 = vst [vmem:[%s5] sm:$0xff] 0.0
    $region33: #{_wbce_call.1} parent=1 // pred_fallthru
      _
    %s146 = sld [smem:[#allocation2]]
    %s147 = sld [smem:[#allocation2 + $0x1]]
    %s148 = sadd.s32 0, 0
    %s149 = smul.u32 %s148, 16
    %s150 = sld [smem:[#allocation4]]
    %s151 = sld [smem:[#allocation4 + $0x1]]
    %v152 = vld [vmem:[%s112] sm:$0xff]
    %v153 = vld [vmem:[%s112 + $0x8] sm:$0xff]
    %v154 = vld [vmem:[%s124] sm:$0xf]
    %v155 = vld [vmem:[%s124 + $0x4] sm:$0xf]
    %v156 = vunpack.c.l.bf16 %v154
    %v157 = vunpack.c.l.bf16 %v155
    %v158 = vmul.f32 %v152, %v156
    %v159 = vmul.f32 %v153, %v157
    %v160 = vsub.f32 %v152, %v158
    %v161 = vsub.f32 %v153, %v159
    %v162 = vsub.f32 0.0, %v152
    %v163 = vsub.f32 0.0, %v153
    %v164 = vmax.f32 %v162, 0.0
    %v165 = vmax.f32 %v163, 0.0
    %v166 = vadd.f32 %v160, %v164
    %v167 = vadd.f32 %v161, %v165
    %v168 = vand.u32 2147483647, %v152
    %v169 = vand.u32 2147483647, %v153
    %v170 = vsub.f32 0.0, %v168
    %v171 = vsub.f32 0.0, %v169
    %v172 = vmul.f32 %v170, 1.442695
    %v173 = vpow.pop %v172
    %v174 = vmul.f32 %v171, 1.442695
    %v175 = vpow.pop %v174
    %v176 = vadd.f32 %v173, 1.0
    %v177 = vadd.f32 %v175, 1.0
    %v178 = vlog2.pop %v176
    %v179 = vmul.f32 %v178, 0.6931472
    %v180 = vlog2.pop %v177
    %v181 = vmul.f32 %v180, 0.6931472
    %v182 = vadd.f32 %v166, %v179
    %v183 = vadd.f32 %v167, %v181
    %v184 = vld [vmem:[%s136] sm:$0xff]
    %v185 = vld [vmem:[%s136 + $0x8] sm:$0xff]
    %v186 = vstv %s151
    %v187 = vmul.f32 %v186, %v184
    %v188 = vmul.f32 %v186, %v185
    %v189 = vstv %s150
    %v190 = vadd.f32 %v189, %v187
    %v191 = vadd.f32 %v189, %v188
    %v192 = vmul.f32 %v182, %v190
    %v193 = vmul.f32 %v183, %v191
    %s194 = sadd.s32 %s149, 16
    %p195 = scmp.ge.s32.totalorder %s194, %s146
    // Predicated region
    $region34: #{_wbce_call.1} parent=1 // pred_check
      %p196 = pneg %p195
    $region35: #{_wbce_call.1} parent=1 // pred_check_branch
      %198 = sbr.rel (%p196) target = $region37
    $region36: #{_wbce_call.1} parent=1 // pred_region
      %v199 = vlaneseq
      %v200 = vshrl.u32 %v199, 7
      %v201 = vadd.s32 %v200, 8
      %v202 = vstv %s149
      %v203 = vadd.s32 %v202, %v200
      %v204 = vadd.s32 %v202, %v201
      %v205 = vlaneseq
      %v206 = vand.u32 %v205, 127
      %s207 = ssub.s32 %s146, 1
      %v208 = vstv %s207
      %vm209 = vcmp.lt.s32.totalorder %v203, %v208
      %vm210 = vcmp.lt.s32.totalorder %v204, %v208
      %vm211 = vcmp.eq.s32.totalorder %v203, %v208
      %vm212 = vcmp.eq.s32.totalorder %v204, %v208
      %v213 = vstv %s147
      %vm214 = vcmp.lt.s32.totalorder %v206, %v213
      %vm215 = vmand %vm211, %vm214
      %vm216 = vmand %vm212, %vm214
      %vm217 = vmor %vm209, %vm215
      %vm218 = vmor %vm210, %vm216
      %v219 = vsel %vm217, %v192, 0.0
      %v220 = vsel %vm218, %v193, 0.0
      %v221 = vld [vmem:[%s5] sm:$0xff]
      %v222 = vadd.f32 %v219, %v220
      %v223 = vadd.f32 %v221, %v222
      %224 = vst [vmem:[%s5] sm:$0xff] %v223
    $region37: #{_wbce_call.1} parent=1 // pred_fallthru
      _
    %p225 = scmp.lt.s32.totalorder %s194, %s146
    // Predicated region
    $region38: #{_wbce_call.1} parent=1 // pred_check
      %p226 = pneg %p225
    $region39: #{_wbce_call.1} parent=1 // pred_check_branch
      %228 = sbr.rel (%p226) target = $region41
    $region40: #{_wbce_call.1} parent=1 // pred_region
      %v229 = vld [vmem:[%s5] sm:$0xff]
      %v230 = vadd.f32 %v192, %v193
      %v231 = vadd.f32 %v229, %v230
      %232 = vst [vmem:[%s5] sm:$0xff] %v231
    $region41: #{_wbce_call.1} parent=1 // pred_fallthru
      _
    // Predicated region
    $region42: #{_wbce_call.1} parent=1 // pred_check
      _
    $region43: #{_wbce_call.1} parent=1 // pred_check_branch
      %234 = sbr.rel (0) target = $region45
    $region44: #{_wbce_call.1} parent=1 // pred_region
      _
    $region45: #{_wbce_call.1} parent=1 // pred_fallthru
      _
    // Predicated region
    $region46: #{_wbce_call.1} parent=1 // pred_check
      _
    $region47: #{_wbce_call.1} parent=1 // pred_check_branch
      %236 = sbr.rel (0) target = $region49
    $region48: #{_wbce_call.1} parent=1 // pred_region
      _
    $region49: #{_wbce_call.1} parent=1 // pred_fallthru
      _
    %237 = vsyncpa [#allocation3], 1
    %238 = vsyncpa [#allocation5], 1

</llo_original>
